<compile_context>
chip_gen: v7x
topology: tpu7x:2x2x1
jax: 0.10.0
libtpu: 0.0.40
codegen_flags: <defaults>
</compile_context>

<pallas_src>
import jax
import jax.numpy as jnp
from jax.experimental import pallas as pl
from jax.experimental.pallas import tpu as pltpu


def _make_kernel(*, seq_total, ts, need_mask):
    """Build the kernel body; seq_total/ts/need_mask are static (trace-time)."""

    def kernel(x_ref, w_ref, o_ref, m_ref):
        # x_ref : (TB, TS, 4*size)   packed input block
        # w_ref : (1, 4*size)        lane-major weight row (resident)
        # o_ref : (TB, 1)            output block (written once, at last k)
        # m_ref : (TB, 4*size) f32   running max accumulator (VMEM scratch)
        k = pl.program_id(1)

        @pl.when(k == 0)
        def _init():
            m_ref[...] = jnp.full_like(m_ref, -jnp.inf)

        # Upcast right after load: keep all compare/mul/reduce math in f32
        # (v5e has no bf16 VPU datapath); no-op for f32 inputs.
        x = x_ref[...].astype(jnp.float32)
        if need_mask:  # static decision: only when TS does not divide seq
            pos = k * ts + jax.lax.broadcasted_iota(jnp.int32, x.shape, 1)
            x = jnp.where(pos < seq_total, x, -jnp.inf)

        # Sequence-wise max pool for this seq chunk, folded into running max.
        m_ref[...] = jnp.maximum(m_ref[...], jnp.max(x, axis=1))

        @pl.when(k == pl.num_programs(1) - 1)
        def _finalize():
            w = w_ref[...].astype(jnp.float32)  # (1, 4*size)
            # concat([CP,CA,CPP,CQ], 1) @ W.T == lane-wise multiply + reduce.
            o_ref[...] = jnp.sum(m_ref[...] * w, axis=-1,
                                 keepdims=True).astype(o_ref.dtype)

    return kernel


def _pick_blocks(bs, seq, d, itemsize, budget_bytes):
    """Choose (batch_block, seq_block) so one input block stays within
    budget_bytes (the pipeline double-buffers it => ~2x that in VMEM)."""
    full_bytes = bs * seq * d * itemsize
    if full_bytes <= budget_bytes:
        return bs, seq                                  # whole problem, grid (1,1)
    row_bytes = seq * d * itemsize                      # one batch row, full seq
    if 8 * row_bytes <= budget_bytes:
        tb = (budget_bytes // row_bytes) // 8 * 8       # multiple of 8 (sublane)
        return min(tb, bs), seq
    # A handful of batch rows do not fit at full seq: split the seq axis too.
    tb = min(8, bs)
    ts = (budget_bytes // (tb * d * itemsize)) // 8 * 8
    ts = max(8, min(ts, seq))
    return tb, ts


def final_pooling(SP, SA, SPP, SQ, weight, *, block_budget_bytes=3 << 20):
    """weight: (4*size, 1) (transpose of nn.Linear(4*size, 1).weight) or (1, 4*size)."""
    bs, seq, size = SP.shape
    d = 4 * size
    assert weight.size == d, "weight must have 4*size elements"

    # Lane-dense packing: one (bs, seq, 4*size) stream instead of four
    # width-`size` streams.
    # TODO(synk): upstream producers should emit this packed layout directly to
    # avoid the extra HBM pass of this concat.
    x = jnp.concatenate([SP, SA, SPP, SQ], axis=-1)
    w_row = jnp.reshape(weight, (1, d))                 # lane-major weight row

    itemsize = jnp.dtype(x.dtype).itemsize
    tb, ts = _pick_blocks(bs, seq, d, itemsize, block_budget_bytes)
    nb, ns = pl.cdiv(bs, tb), pl.cdiv(seq, ts)
    need_mask = (seq % ts) != 0

    kernel = _make_kernel(seq_total=seq, ts=ts, need_mask=need_mask)

    cost = pl.CostEstimate(
        flops=int(bs * seq * d + 2 * bs * d),           # max-compares + mul/add reduce
        transcendentals=0,
        bytes_accessed=int(bs * seq * d * itemsize
                           + d * jnp.dtype(w_row.dtype).itemsize
                           + bs * 4),
    )

    return pl.pallas_call(
        kernel,
        out_shape=jax.ShapeDtypeStruct((bs, 1), jnp.float32),
        grid=(nb, ns),
        in_specs=[
            pl.BlockSpec((tb, ts, d), lambda i, k: (i, k, 0)),   # packed inputs
            pl.BlockSpec((1, d), lambda i, k: (0, 0)),           # weight, resident
        ],
        out_specs=pl.BlockSpec((tb, 1), lambda i, k: (i, 0)),
        scratch_shapes=[pltpu.VMEM((tb, d), jnp.float32)],       # running max
        compiler_params=pltpu.CompilerParams(
            dimension_semantics=("parallel", "arbitrary")),
        cost_estimate=cost,
    )(x, w_row)


def final_pooling_ref(SP, SA, SPP, SQ, weight):
    """Pure-JAX reference mirroring the PyTorch forward."""
    cp = jnp.max(SP, axis=1)
    ca = jnp.max(SA, axis=1)
    cpp = jnp.max(SPP, axis=1)
    cq = jnp.max(SQ, axis=1)
    final = jnp.concatenate([cp, ca, cpp, cq], axis=1)
    return final @ jnp.reshape(weight, (4 * SP.shape[-1], 1))


if __name__ == "__main__":
    # Small synthetic shapes consistent with the forward: (bs, seq, size).
    bs, seq, size = 2, 8, 32

    key = jax.random.PRNGKey(0)
    k_sp, k_sa, k_spp, k_sq, k_w = jax.random.split(key, 5)

    SP = jax.random.normal(k_sp, (bs, seq, size), dtype=jnp.float32)
    SA = jax.random.normal(k_sa, (bs, seq, size), dtype=jnp.float32)
    SPP = jax.random.normal(k_spp, (bs, seq, size), dtype=jnp.float32)
    SQ = jax.random.normal(k_sq, (bs, seq, size), dtype=jnp.float32)

    # nn.Linear(4*size, 1, bias=False): PyTorch weight is (1, 4*size); we keep
    # its transpose (4*size, 1) — the wrapper accepts either layout.
    W = (jax.random.normal(k_w, (4 * size, 1), dtype=jnp.float32)
         / jnp.sqrt(4.0 * size))

    out = jax.block_until_ready(final_pooling(SP, SA, SPP, SQ, W))
    ref = final_pooling_ref(SP, SA, SPP, SQ, W)

    assert out.shape == (bs, 1), out.shape
    assert jnp.allclose(out, ref, atol=1e-5, rtol=1e-5), (out, ref)

    print("KERNEL_OK")
</pallas_src>

<mosaic_0001>
module attributes {stable_mosaic.version = 11 : i64} {
  func.func @kernel(%arg0: i32, %arg1: i32, %arg2: memref<2x8x128xf32, #tpu.memory_space<vmem>>, %arg3: memref<1x128xf32, #tpu.memory_space<vmem>>, %arg4: memref<2x1xf32, #tpu.memory_space<vmem>>, %arg5: memref<2x128xf32, #tpu.memory_space<vmem>>) attributes {dimension_semantics = [#tpu.dimension_semantics<parallel>, #tpu.dimension_semantics<arbitrary>], iteration_bounds = array<i64: 1, 1>, scalar_prefetch = 0 : i64, scratch_operands = 1 : i64, tpu.core_type = #tpu.core_type<tc>, window_params = [{transform_indices = @transform_0, window_bounds = array<i64: 2, 8, 128>}, {pipeline_mode = #tpu.pipeline_mode<synchronous>, transform_indices = @transform_1, window_bounds = array<i64: 1, 128>}, {transform_indices = @transform_2, window_bounds = array<i64: 2, 1>}]} {
    %c0_i32 = arith.constant 0 : i32
    %0 = arith.cmpi eq, %arg1, %c0_i32 : i32
    %1 = arith.extui %0 : i1 to i32
    %c0_i32_0 = arith.constant 0 : i32
    %2 = arith.cmpi ne, %1, %c0_i32_0 : i32
    scf.if %2 {
      %cst_9 = arith.constant 0xFF800000 : f32
      %11 = vector.broadcast %cst_9 : f32 to vector<2x128xf32>
      %c0_10 = arith.constant 0 : index
      %c0_11 = arith.constant 0 : index
      %12 = vector.load %arg5[%c0_10, %c0_11] : memref<2x128xf32, #tpu.memory_space<vmem>>, vector<2x128xf32>
      tpu.vector_store %arg5[%c0_10, %c0_11], %11 {strides = array<i32>} : memref<2x128xf32, #tpu.memory_space<vmem>>, vector<2x128xf32>,
    } else {
    }
    %c0 = arith.constant 0 : index
    %c0_1 = arith.constant 0 : index
    %c0_2 = arith.constant 0 : index
    %3 = vector.load %arg2[%c0, %c0_1, %c0_2] : memref<2x8x128xf32, #tpu.memory_space<vmem>>, vector<2x8x128xf32>
    %c0_3 = arith.constant 0 : index
    %c0_4 = arith.constant 0 : index
    %4 = vector.load %arg5[%c0_3, %c0_4] : memref<2x128xf32, #tpu.memory_space<vmem>>, vector<2x128xf32>
    %cst = arith.constant dense<0xFF800000> : vector<2x128xf32>
    %5 = vector.multi_reduction <maximumf>, %3, %cst [1] : vector<2x8x128xf32> to vector<2x128xf32>
    %6 = arith.maximumf %4, %5 : vector<2x128xf32>
    %c0_5 = arith.constant 0 : index
    %c0_6 = arith.constant 0 : index
    %7 = vector.load %arg5[%c0_5, %c0_6] : memref<2x128xf32, #tpu.memory_space<vmem>>, vector<2x128xf32>
    tpu.vector_store %arg5[%c0_5, %c0_6], %6 {strides = array<i32>} : memref<2x128xf32, #tpu.memory_space<vmem>>, vector<2x128xf32>,
    %c0_i32_7 = arith.constant 0 : i32
    %8 = arith.cmpi eq, %arg1, %c0_i32_7 : i32
    %9 = arith.extui %8 : i1 to i32
    %c0_i32_8 = arith.constant 0 : i32
    %10 = arith.cmpi ne, %9, %c0_i32_8 : i32
    scf.if %10 {
      %c0_9 = arith.constant 0 : index
      %c0_10 = arith.constant 0 : index
      %11 = vector.load %arg3[%c0_9, %c0_10] : memref<1x128xf32, #tpu.memory_space<vmem>>, vector<1x128xf32>
      %c0_11 = arith.constant 0 : index
      %c0_12 = arith.constant 0 : index
      %12 = vector.load %arg5[%c0_11, %c0_12] : memref<2x128xf32, #tpu.memory_space<vmem>>, vector<2x128xf32>
      %13 = vector.broadcast %11 : vector<1x128xf32> to vector<2x128xf32>
      %14 = arith.mulf %12, %13 : vector<2x128xf32>
      %cst_13 = arith.constant dense<0.000000e+00> : vector<2xf32>
      %15 = vector.multi_reduction <add>, %14, %cst_13 [1] : vector<2x128xf32> to vector<2xf32>
      %16 = vector.shape_cast %15 : vector<2xf32> to vector<2x1xf32>
      %c0_14 = arith.constant 0 : index
      %c0_15 = arith.constant 0 : index
      %17 = vector.load %arg4[%c0_14, %c0_15] : memref<2x1xf32, #tpu.memory_space<vmem>>, vector<2x1xf32>
      tpu.vector_store %arg4[%c0_14, %c0_15], %16 {strides = array<i32>} : memref<2x1xf32, #tpu.memory_space<vmem>>, vector<2x1xf32>,
    } else {
    }
    return
  }
  func.func @transform_0(%arg0: i32, %arg1: i32) -> (i32, i32, i32) {
    %c0_i32 = arith.constant 0 : i32
    %c0_i32_0 = arith.constant 0 : i32
    return %arg0, %arg1, %c0_i32 : i32, i32, i32
  }
  func.func @transform_1(%arg0: i32, %arg1: i32) -> (i32, i32) {
    %c0_i32 = arith.constant 0 : i32
    %c0_i32_0 = arith.constant 0 : i32
    %c0_i32_1 = arith.constant 0 : i32
    return %c0_i32, %c0_i32_0 : i32, i32
  }
  func.func @transform_2(%arg0: i32, %arg1: i32) -> (i32, i32) {
    %c0_i32 = arith.constant 0 : i32
    %c0_i32_0 = arith.constant 0 : i32
    return %arg0, %c0_i32 : i32, i32
  }
}

</mosaic_0001>

<llo_original>
// kernel: tpu_custom_call.1
$region0: #{tpu_custom_call.1}
  #allocation0 [shape = 'u32[]', space=smem, size = 0x4, offset = 0x4, fixed_abs, tag = 'smem constant byte address 0x4 - core index']
  #allocation1 [shape = 'u32[144,128]{1,0:T(1,128)}', space=vmem, size = 0x12000, scoped, tag = 'internal scratch']
  #allocation2 [shape = 'f32[2,128]{1,0:T(2,128)}', space=vmem, size = 0x400, scoped, tag = 'scratch operand']
  %s0 = inlined_call_operand.hbm [shape: f32[2,8,128], index: 0, kind: input, shape index: {}]
  %s1 = inlined_call_operand.vmem [shape: f32[1,128], index: 1, kind: input, shape index: {}]
  %s2 = inlined_call_operand.vmem [shape: f32[2,1], index: 2, kind: output, shape index: {}]
  %s3 = sld [smem:[#allocation0]]
  $region30: #{tpu_custom_call.1} parent=0
    _
  %s5 = ssub.s32 1, %s3
  %s6 = scalar_select 0, %s5, %s3
  $region1: #{tpu_custom_call.1} parent=0
    #allocation3 [shape = 'u8[8192]{0}', space=vmem, size = 0x2000, scoped, tag = 'input window, operand 0, single buffered']
    #allocation4 [shape = 's32[1]{0}', space=sflag, size = 0x4, scoped, tag = 'scoped memory for tpu_custom_call.1']
    %7 = vsyncpa [#allocation4], 0
    // Predicated region
    $region2: #{tpu_custom_call.1} parent=1 // pred_check
      _
    $region3: #{tpu_custom_call.1} parent=1 // pred_check_branch
      %9 = sbr.rel (0) target = $region5
    $region4: #{tpu_custom_call.1} parent=1 // pred_region
      %s11 = ssub.s32 256, 256
      %12 = vsyncadd [#allocation4], %s11
      %s13 = sshll.u32 [#allocation3], 4
      %s14 = int_to_ptr.vmem [resolvable:$true] %s13
      %19 = dma.hbm_to_vmem [thread:$0]  %s0, 256, %s14, [#allocation4], 128, 128, 8
    $region5: #{tpu_custom_call.1} parent=1 // pred_fallthru
      _
    // Predicated region
    $region6: #{tpu_custom_call.1} parent=1 // pred_check
      _
    $region7: #{tpu_custom_call.1} parent=1 // pred_check_branch
      %21 = sbr.rel (0) target = $region9
    $region8: #{tpu_custom_call.1} parent=1 // pred_region
      _
    $region9: #{tpu_custom_call.1} parent=1 // pred_fallthru
      _
    // Predicated region
    $region10: #{tpu_custom_call.1} parent=1 // pred_check
      _
    $region11: #{tpu_custom_call.1} parent=1 // pred_check_branch
      %23 = sbr.rel (0) target = $region13
    $region12: #{tpu_custom_call.1} parent=1 // pred_region
      %24 = dma.done [#allocation4], 256
    $region13: #{tpu_custom_call.1} parent=1 // pred_fallthru
      _
    %p25 = scmp.eq.s32.totalorder 0, 0
    // Predicated region
    $region14: #{tpu_custom_call.1} parent=1 // pred_check
      %p26 = pneg %p25
    $region15: #{tpu_custom_call.1} parent=1 // pred_check_branch
      %28 = sbr.rel (%p26) target = $region17
    $region16: #{tpu_custom_call.1} parent=1 // pred_region
      %29 = vst [vmem:[#allocation2] sm:$0x3] -inf
    $region17: #{tpu_custom_call.1} parent=1 // pred_fallthru
      _
    %v30 = vld [vmem:[#allocation3] sm:$0xff]
    %v31 = vld [vmem:[#allocation3 + $0x8] sm:$0xff]
    %v32 = vld [vmem:[#allocation2] sm:$0x3]
    %v33 = vrot.slane %v30, 4
    %v34 = vmax.f32 %v30, %v33
    %v35 = vrot.slane %v34, 2
    %v36 = vmax.f32 %v34, %v35
    %v37 = vrot.slane %v36, 1
    %v38 = vmax.f32 %v36, %v37
    %v39 = vrot.slane %v31, 4
    %v40 = vmax.f32 %v31, %v39
    %v41 = vrot.slane %v40, 2
    %v42 = vmax.f32 %v40, %v41
    %v43 = vrot.slane %v42, 1
    %v44 = vmax.f32 %v42, %v43
    %vm47 = vcmask 1041409
    %v48 = vsel %vm47, %v44, %v38
    %v50 = vmax.f32 %v32, %v48
    %51 = vst [vmem:[#allocation2] sm:$0x3] %v50
    // Predicated region
    $region18: #{tpu_custom_call.1} parent=1 // pred_check
      %p52 = pneg %p25
    $region19: #{tpu_custom_call.1} parent=1 // pred_check_branch
      %54 = sbr.rel (%p52) target = $region21
    $region20: #{tpu_custom_call.1} parent=1 // pred_region
      %v55 = vld [vmem:[%s1] sm:$0x1]
      %v56 = vld [vmem:[#allocation2] sm:$0x3]
      %v58 = vlaneseq
      %v59 = vshrl.u32 %v58, 7
      %v60 = vsub.s32 0, %v59
      %v61 = vrot.slane %v55, %v60
      %v63 = vmul.f32 %v56, %v61
      %vm64 = vcmask 1041408
      %v65 = vsel %vm64, %v63, 0.0
      %66 = vadd.xlane.f32.xlu0 %v65
      %v67 = vpop.xlane.xlu0 %66
      %vm68 = vcmask 1024
      %69 = vst.msk [vmem:[%s2] sm:$0x3] %vm68, %v67
    $region21: #{tpu_custom_call.1} parent=1 // pred_fallthru
      _
    // Predicated region
    $region22: #{tpu_custom_call.1} parent=1 // pred_check
      _
    $region23: #{tpu_custom_call.1} parent=1 // pred_check_branch
      %71 = sbr.rel (0) target = $region25
    $region24: #{tpu_custom_call.1} parent=1 // pred_region
      _
    $region25: #{tpu_custom_call.1} parent=1 // pred_fallthru
      _
    // Predicated region
    $region26: #{tpu_custom_call.1} parent=1 // pred_check
      _
    $region27: #{tpu_custom_call.1} parent=1 // pred_check_branch
      %73 = sbr.rel (0) target = $region29
    $region28: #{tpu_custom_call.1} parent=1 // pred_region
      _
    $region29: #{tpu_custom_call.1} parent=1 // pred_fallthru
      _
    %74 = vsyncpa [#allocation4], 1

</llo_original>
